<compile_context>
chip_gen: v6e
topology: v6e:2x2x1
jax: 0.10.0
libtpu: 0.0.40
codegen_flags: <defaults>
</compile_context>

<pallas_src>
import functools
import math

import jax
import jax.numpy as jnp
from jax.experimental import pallas as pl
from jax.experimental.pallas import tpu as pltpu


_MASK_W = 128    # padded width of every mask-branch layer
_REG_W = 256     # padded width of the wide reg-branch layers (200 -> 256)
_OUT_W = 128     # lane-dense output width (real out features = 3)
_NEG = -1e30     # "minus infinity" bias for padded softmax lanes


def _round_up(n, m):
    return ((n + m - 1) // m) * m


# ----------------------------------------------------------------------------
# Kernel: one (tile_b, ·) batch tile, whole forward pass in VMEM.
#   x_a_ref : (tile_b, xa_p) f32       x_ref : (tile_b, xd_p) f32
#   mw_ref  : (4, 128, 128) bf16       rw_ref: (4, 256, 256) bf16
#   b_ref   : (8, 256) f32 (rows 0-3 mask biases, 4-7 reg biases)
#   out_ref : (tile_b, 128) f32  (cols 3.. are tanh(0)=0 padding)
# ----------------------------------------------------------------------------
def _extra_attention_kernel(x_a_ref, x_ref, mw_ref, rw_ref, b_ref, out_ref, *,
                            bf16_epilogue):
    f32 = jnp.float32
    bf16 = jnp.bfloat16

    x_a = x_a_ref[...]
    x = x_ref[...]
    xa_p = x_a.shape[1]
    xd_p = x.shape[1]

    b = b_ref[...]                                    # (8, 256) f32, loaded once

    def dense_relu(a, w, bias_row):
        # bf16 MXU inputs, f32 accumulation; epilogue dtype is generation-gated.
        y = jnp.dot(a.astype(bf16), w, preferred_element_type=f32)
        if bf16_epilogue:
            y = y.astype(bf16) + bias_row.astype(bf16)
        else:
            y = y + bias_row
        return jnp.maximum(y, 0.0)

    # ---- mask branch: Linear->ReLU x3, Linear, Softmax(dim=1) ----
    h = dense_relu(x_a, mw_ref[0, :xa_p, :], b[0:1, :_MASK_W])
    h = dense_relu(h, mw_ref[1], b[1:2, :_MASK_W])
    h = dense_relu(h, mw_ref[2], b[2:3, :_MASK_W])
    logits = jnp.dot(h.astype(bf16), mw_ref[3],
                     preferred_element_type=f32) + b[3:4, :_MASK_W]
    logits = logits[:, :xd_p]          # padded lanes (if any) carry a -1e30 bias

    # numerically-stable softmax along features (f32, exact divide)
    m = jnp.max(logits, axis=-1, keepdims=True)
    e = jnp.exp(logits - m)
    mask = e / jnp.sum(e, axis=-1, keepdims=True)

    # weighted_x = mask * x
    if bf16_epilogue:
        wx = mask.astype(bf16) * x.astype(bf16)
    else:
        wx = mask * x

    # ---- regression branch: Linear->ReLU x3, Linear, Tanh ----
    g = dense_relu(wx, rw_ref[0, :xd_p, :], b[4:5, :])
    g = dense_relu(g, rw_ref[1], b[5:6, :])
    g = dense_relu(g, rw_ref[2, :, :_OUT_W], b[6:7, :_OUT_W])
    y = jnp.dot(g.astype(bf16), rw_ref[3, :_OUT_W, :_OUT_W],
                preferred_element_type=f32) + b[7:8, :_OUT_W]
    out_ref[...] = jnp.tanh(y).astype(out_ref.dtype)


# ----------------------------------------------------------------------------
# Wrapper: batch-gridded pallas_call with VMEM-resident packed weights.
# ----------------------------------------------------------------------------
def extra_attention_forward(x_a, x, params, *, tile_b=2048, vmem_limit_mb=48):
    mask_w, reg_w, biases = params
    B, x_a_dim = x_a.shape
    x_dim = x.shape[1]

    # Pad feature dims to sublane multiples (weight slabs are zero-padded and
    # the softmax pad lanes carry -1e30 biases, so results are exact).
    xa_p = _round_up(x_a_dim, 8)
    xd_p = _round_up(x_dim, 8)
    if xa_p != x_a_dim:
        x_a = jnp.pad(x_a, ((0, 0), (0, xa_p - x_a_dim)))
    if xd_p != x_dim:
        x = jnp.pad(x, ((0, 0), (0, xd_p - x_dim)))

    # Batch tiling: cap tile so the "parallel" axis has >= 2 steps whenever the
    # batch spans more than one tile -> both v7x TensorCores get work.
    tile_b = min(tile_b, max(_round_up(-(-B // 2), 8), 8))
    b_pad = _round_up(B, tile_b)
    if b_pad != B:
        x_a = jnp.pad(x_a, ((0, b_pad - B), (0, 0)))
        x = jnp.pad(x, ((0, b_pad - B), (0, 0)))
    grid = (b_pad // tile_b,)

    batch_map = lambda i: (i, 0)
    const2 = lambda i: (0, 0)        # constant block index -> VMEM-resident
    const3 = lambda i: (0, 0, 0)

    in_specs = [
        pl.BlockSpec((tile_b, xa_p), batch_map),
        pl.BlockSpec((tile_b, xd_p), batch_map),
        pl.BlockSpec(mask_w.shape, const3),
        pl.BlockSpec(reg_w.shape, const3),
        pl.BlockSpec(biases.shape, const2),
    ]

    # Generation gate: bf16 epilogue only where the VPU has a bf16 datapath.
    kind = ""
    try:
        kind = jax.devices()[0].device_kind.lower()
    except Exception:
        pass
    bf16_epilogue = ("v6" in kind) or ("v7" in kind) or ("tpu7" in kind)

    kernel = functools.partial(_extra_attention_kernel,
                               bf16_epilogue=bf16_epilogue)

    # Advisory cost estimate (padded effective widths).
    flops = 2 * b_pad * (xa_p * 128 + 3 * 128 * 128
                         + xd_p * 256 + 256 * 256 + 256 * 128 + 128 * 128)
    transcendentals = b_pad * (xd_p + _OUT_W)
    bytes_accessed = (x_a.size * 4 + x.size * 4 + b_pad * _OUT_W * 4
                      + mask_w.size * 2 + reg_w.size * 2 + biases.size * 4)

    out = pl.pallas_call(
        kernel,
        out_shape=jax.ShapeDtypeStruct((b_pad, _OUT_W), jnp.float32),
        grid=grid,
        in_specs=in_specs,
        out_specs=pl.BlockSpec((tile_b, _OUT_W), batch_map),
        compiler_params=pltpu.CompilerParams(
            dimension_semantics=("parallel",),
            vmem_limit_bytes=vmem_limit_mb * 1024 * 1024,
        ),
        cost_estimate=pl.CostEstimate(
            flops=flops,
            transcendentals=transcendentals,
            bytes_accessed=bytes_accessed,
        ),
    )(x_a, x, mask_w, reg_w, biases)
    return out[:B, :3]


# ----------------------------------------------------------------------------
# Parameter init mirroring weights_init_kaimingUniform:
#   Linear weights: kaiming_uniform_(mode='fan_in', nonlinearity='relu')
#                   -> U(-sqrt(6/fan_in), +sqrt(6/fan_in)); biases = 0.
# Weights are stored transposed (in, out), zero-padded into 2 bf16 slabs plus
# one f32 bias table. The last mask-layer bias gets -1e30 on padded softmax
# lanes so they vanish after exp (exact).
# ----------------------------------------------------------------------------
def _kaiming_uniform_t(key, fan_in, fan_out):
    bound = math.sqrt(6.0 / fan_in)
    return jax.random.uniform(key, (fan_in, fan_out), dtype=jnp.float32,
                              minval=-bound, maxval=bound)


def init_params(key, x_a_dim, x_dim, reg_hidden=200):
    assert x_a_dim <= _MASK_W and x_dim <= _MASK_W and reg_hidden <= _REG_W
    xd_p = _round_up(x_dim, 8)

    mask_shapes = [(x_a_dim, 64), (64, 128), (128, 64), (64, x_dim)]
    reg_shapes = [(x_dim, reg_hidden), (reg_hidden, reg_hidden),
                  (reg_hidden, 10), (10, 3)]

    keys = jax.random.split(key, 8)
    mask_w = jnp.zeros((4, _MASK_W, _MASK_W), jnp.float32)
    for i, (fi, fo) in enumerate(mask_shapes):
        mask_w = mask_w.at[i, :fi, :fo].set(_kaiming_uniform_t(keys[i], fi, fo))
    reg_w = jnp.zeros((4, _REG_W, _REG_W), jnp.float32)
    for i, (fi, fo) in enumerate(reg_shapes):
        reg_w = reg_w.at[i, :fi, :fo].set(_kaiming_uniform_t(keys[4 + i], fi, fo))

    biases = jnp.zeros((8, _REG_W), jnp.float32)          # all biases = 0
    if xd_p > x_dim:
        biases = biases.at[3, x_dim:xd_p].set(_NEG)       # kill padded softmax lanes

    return (mask_w.astype(jnp.bfloat16), reg_w.astype(jnp.bfloat16), biases)


# ----------------------------------------------------------------------------
# Pure-JAX reference mirroring the kernel math (bf16 MXU inputs, f32 elsewhere).
# ----------------------------------------------------------------------------
def reference_forward(x_a, x, params):
    mask_w, reg_w, biases = params
    mw = mask_w.astype(jnp.float32)
    rw = reg_w.astype(jnp.float32)
    b = biases

    def bf16_dot(a, w):
        return jnp.dot(a.astype(jnp.bfloat16).astype(jnp.float32), w)

    xd_p = _round_up(x.shape[1], 8)
    xa = jnp.pad(x_a, ((0, 0), (0, _MASK_W - x_a.shape[1])))
    xx = jnp.pad(x, ((0, 0), (0, xd_p - x.shape[1])))

    h = xa
    for i in range(3):
        h = jax.nn.relu(bf16_dot(h, mw[i]) + b[i, :_MASK_W])
    logits = (bf16_dot(h, mw[3]) + b[3, :_MASK_W])[:, :xd_p]
    mask = jax.nn.softmax(logits, axis=-1)
    wx = mask * xx
    g = jax.nn.relu(bf16_dot(wx, rw[0, :xd_p, :]) + b[4])
    g = jax.nn.relu(bf16_dot(g, rw[1]) + b[5])
    g = jax.nn.relu(bf16_dot(g, rw[2, :, :_OUT_W]) + b[6, :_OUT_W])
    y = jnp.tanh(bf16_dot(g, rw[3, :_OUT_W, :_OUT_W]) + b[7, :_OUT_W])
    return y[:, :3]


if __name__ == "__main__":
    x_a_dim = 32
    x_dim = 16
    batch = 8

    key = jax.random.PRNGKey(0)
    k_xa, k_x, k_p = jax.random.split(key, 3)

    x_a = jax.random.normal(k_xa, (batch, x_a_dim), dtype=jnp.float32)
    x = jax.random.normal(k_x, (batch, x_dim), dtype=jnp.float32)
    params = init_params(k_p, x_a_dim, x_dim)

    out = jax.block_until_ready(extra_attention_forward(x_a, x, params))
    ref = jax.block_until_ready(reference_forward(x_a, x, params))

    assert out.shape == (batch, 3)
    assert bool(jnp.all(jnp.isfinite(out)))
    assert bool(jnp.all(jnp.abs(out) <= 1.0))          # tanh range sanity
    max_err = float(jnp.max(jnp.abs(out - ref)))
    assert max_err < 5e-2, f"mismatch vs reference: {max_err}"
    print("KERNEL_OK")
</pallas_src>

<mosaic_0001>
module attributes {stable_mosaic.version = 11 : i64} {
  func.func @_extra_attention_kernel(%arg0: i32, %arg1: memref<8x32xf32, #tpu.memory_space<vmem>>, %arg2: memref<8x16xf32, #tpu.memory_space<vmem>>, %arg3: memref<4x128x128xbf16, #tpu.memory_space<vmem>>, %arg4: memref<4x256x256xbf16, #tpu.memory_space<vmem>>, %arg5: memref<8x256xf32, #tpu.memory_space<vmem>>, %arg6: memref<8x128xf32, #tpu.memory_space<vmem>>) attributes {dimension_semantics = [#tpu.dimension_semantics<parallel>], iteration_bounds = array<i64: 1>, scalar_prefetch = 0 : i64, scratch_operands = 0 : i64, tpu.core_type = #tpu.core_type<tc>, window_params = [{transform_indices = @transform_0, window_bounds = array<i64: 8, 32>}, {transform_indices = @transform_1, window_bounds = array<i64: 8, 16>}, {pipeline_mode = #tpu.pipeline_mode<synchronous>, transform_indices = @transform_2, window_bounds = array<i64: 4, 128, 128>}, {pipeline_mode = #tpu.pipeline_mode<synchronous>, transform_indices = @transform_3, window_bounds = array<i64: 4, 256, 256>}, {pipeline_mode = #tpu.pipeline_mode<synchronous>, transform_indices = @transform_4, window_bounds = array<i64: 8, 256>}, {transform_indices = @transform_5, window_bounds = array<i64: 8, 128>}]} {
    %c0 = arith.constant 0 : index
    %c0_0 = arith.constant 0 : index
    %0 = vector.load %arg1[%c0, %c0_0] : memref<8x32xf32, #tpu.memory_space<vmem>>, vector<8x32xf32>
    %c0_1 = arith.constant 0 : index
    %c0_2 = arith.constant 0 : index
    %1 = vector.load %arg2[%c0_1, %c0_2] : memref<8x16xf32, #tpu.memory_space<vmem>>, vector<8x16xf32>
    %c0_3 = arith.constant 0 : index
    %c0_4 = arith.constant 0 : index
    %2 = vector.load %arg5[%c0_3, %c0_4] : memref<8x256xf32, #tpu.memory_space<vmem>>, vector<8x256xf32>
    %c0_5 = arith.constant 0 : index
    %c0_6 = arith.constant 0 : index
    %c0_7 = arith.constant 0 : index
    %3 = vector.load %arg3[%c0_5, %c0_6, %c0_7] : memref<4x128x128xbf16, #tpu.memory_space<vmem>>, vector<1x32x128xbf16>
    %4 = vector.shape_cast %3 : vector<1x32x128xbf16> to vector<32x128xbf16>
    %5 = vector.extract_strided_slice %2 {offsets = [0, 0], sizes = [1, 128], strides = [1, 1]} : vector<8x256xf32> to vector<1x128xf32>
    %6 = arith.truncf %0 : vector<8x32xf32> to vector<8x32xbf16>
    %cst = arith.constant dense<0.000000e+00> : vector<8x128xf32>
    %7 = tpu.matmul %6, %4, %cst {dimension_numbers = #tpu.dot_dimension_numbers<[1], [0], [0], [1], [0, 0, 1, 1], [], []>} : vector<8x32xbf16>, vector<32x128xbf16>, vector<8x128xf32> -> vector<8x128xf32>
    %8 = vector.broadcast %5 : vector<1x128xf32> to vector<8x128xf32>
    %9 = arith.addf %7, %8 : vector<8x128xf32>
    %cst_8 = arith.constant 0.000000e+00 : f32
    %10 = vector.broadcast %cst_8 : f32 to vector<8x128xf32>
    %11 = arith.maximumf %9, %10 : vector<8x128xf32>
    %c1 = arith.constant 1 : index
    %c0_9 = arith.constant 0 : index
    %c0_10 = arith.constant 0 : index
    %12 = vector.load %arg3[%c1, %c0_9, %c0_10] : memref<4x128x128xbf16, #tpu.memory_space<vmem>>, vector<1x128x128xbf16>
    %13 = vector.shape_cast %12 : vector<1x128x128xbf16> to vector<128x128xbf16>
    %14 = vector.extract_strided_slice %2 {offsets = [1, 0], sizes = [1, 128], strides = [1, 1]} : vector<8x256xf32> to vector<1x128xf32>
    %15 = arith.truncf %11 : vector<8x128xf32> to vector<8x128xbf16>
    %cst_11 = arith.constant dense<0.000000e+00> : vector<8x128xf32>
    %16 = tpu.matmul %15, %13, %cst_11 {dimension_numbers = #tpu.dot_dimension_numbers<[1], [0], [0], [1], [0, 0, 1, 1], [], []>} : vector<8x128xbf16>, vector<128x128xbf16>, vector<8x128xf32> -> vector<8x128xf32>
    %17 = vector.broadcast %14 : vector<1x128xf32> to vector<8x128xf32>
    %18 = arith.addf %16, %17 : vector<8x128xf32>
    %cst_12 = arith.constant 0.000000e+00 : f32
    %19 = vector.broadcast %cst_12 : f32 to vector<8x128xf32>
    %20 = arith.maximumf %18, %19 : vector<8x128xf32>
    %c2 = arith.constant 2 : index
    %c0_13 = arith.constant 0 : index
    %c0_14 = arith.constant 0 : index
    %21 = vector.load %arg3[%c2, %c0_13, %c0_14] : memref<4x128x128xbf16, #tpu.memory_space<vmem>>, vector<1x128x128xbf16>
    %22 = vector.shape_cast %21 : vector<1x128x128xbf16> to vector<128x128xbf16>
    %23 = vector.extract_strided_slice %2 {offsets = [2, 0], sizes = [1, 128], strides = [1, 1]} : vector<8x256xf32> to vector<1x128xf32>
    %24 = arith.truncf %20 : vector<8x128xf32> to vector<8x128xbf16>
    %cst_15 = arith.constant dense<0.000000e+00> : vector<8x128xf32>
    %25 = tpu.matmul %24, %22, %cst_15 {dimension_numbers = #tpu.dot_dimension_numbers<[1], [0], [0], [1], [0, 0, 1, 1], [], []>} : vector<8x128xbf16>, vector<128x128xbf16>, vector<8x128xf32> -> vector<8x128xf32>
    %26 = vector.broadcast %23 : vector<1x128xf32> to vector<8x128xf32>
    %27 = arith.addf %25, %26 : vector<8x128xf32>
    %cst_16 = arith.constant 0.000000e+00 : f32
    %28 = vector.broadcast %cst_16 : f32 to vector<8x128xf32>
    %29 = arith.maximumf %27, %28 : vector<8x128xf32>
    %30 = arith.truncf %29 : vector<8x128xf32> to vector<8x128xbf16>
    %c3 = arith.constant 3 : index
    %c0_17 = arith.constant 0 : index
    %c0_18 = arith.constant 0 : index
    %31 = vector.load %arg3[%c3, %c0_17, %c0_18] : memref<4x128x128xbf16, #tpu.memory_space<vmem>>, vector<1x128x128xbf16>
    %32 = vector.shape_cast %31 : vector<1x128x128xbf16> to vector<128x128xbf16>
    %cst_19 = arith.constant dense<0.000000e+00> : vector<8x128xf32>
    %33 = tpu.matmul %30, %32, %cst_19 {dimension_numbers = #tpu.dot_dimension_numbers<[1], [0], [0], [1], [0, 0, 1, 1], [], []>} : vector<8x128xbf16>, vector<128x128xbf16>, vector<8x128xf32> -> vector<8x128xf32>
    %34 = vector.extract_strided_slice %2 {offsets = [3, 0], sizes = [1, 128], strides = [1, 1]} : vector<8x256xf32> to vector<1x128xf32>
    %35 = vector.broadcast %34 : vector<1x128xf32> to vector<8x128xf32>
    %36 = arith.addf %33, %35 : vector<8x128xf32>
    %37 = vector.extract_strided_slice %36 {offsets = [0, 0], sizes = [8, 16], strides = [1, 1]} : vector<8x128xf32> to vector<8x16xf32>
    %cst_20 = arith.constant dense<0xFF800000> : vector<8xf32>
    %38 = vector.multi_reduction <maximumf>, %37, %cst_20 [1] : vector<8x16xf32> to vector<8xf32>
    %39 = vector.shape_cast %38 : vector<8xf32> to vector<8x1xf32>
    %40 = vector.broadcast %39 : vector<8x1xf32> to vector<8x16xf32>
    %41 = arith.subf %37, %40 : vector<8x16xf32>
    %42 = math.exp %41 : vector<8x16xf32>
    %cst_21 = arith.constant dense<0.000000e+00> : vector<8xf32>
    %43 = vector.multi_reduction <add>, %42, %cst_21 [1] : vector<8x16xf32> to vector<8xf32>
    %44 = vector.shape_cast %43 : vector<8xf32> to vector<8x1xf32>
    %45 = vector.broadcast %44 : vector<8x1xf32> to vector<8x16xf32>
    %46 = arith.divf %42, %45 : vector<8x16xf32>
    %47 = arith.mulf %46, %1 : vector<8x16xf32>
    %c0_22 = arith.constant 0 : index
    %c0_23 = arith.constant 0 : index
    %c0_24 = arith.constant 0 : index
    %48 = vector.load %arg4[%c0_22, %c0_23, %c0_24] : memref<4x256x256xbf16, #tpu.memory_space<vmem>>, vector<1x16x256xbf16>
    %49 = vector.shape_cast %48 : vector<1x16x256xbf16> to vector<16x256xbf16>
    %50 = vector.extract_strided_slice %2 {offsets = [4, 0], sizes = [1, 256], strides = [1, 1]} : vector<8x256xf32> to vector<1x256xf32>
    %51 = arith.truncf %47 : vector<8x16xf32> to vector<8x16xbf16>
    %cst_25 = arith.constant dense<0.000000e+00> : vector<8x256xf32>
    %52 = tpu.matmul %51, %49, %cst_25 {dimension_numbers = #tpu.dot_dimension_numbers<[1], [0], [0], [1], [0, 0, 1, 1], [], []>} : vector<8x16xbf16>, vector<16x256xbf16>, vector<8x256xf32> -> vector<8x256xf32>
    %53 = vector.broadcast %50 : vector<1x256xf32> to vector<8x256xf32>
    %54 = arith.addf %52, %53 : vector<8x256xf32>
    %cst_26 = arith.constant 0.000000e+00 : f32
    %55 = vector.broadcast %cst_26 : f32 to vector<8x256xf32>
    %56 = arith.maximumf %54, %55 : vector<8x256xf32>
    %c1_27 = arith.constant 1 : index
    %c0_28 = arith.constant 0 : index
    %c0_29 = arith.constant 0 : index
    %57 = vector.load %arg4[%c1_27, %c0_28, %c0_29] : memref<4x256x256xbf16, #tpu.memory_space<vmem>>, vector<1x256x256xbf16>
    %58 = vector.shape_cast %57 : vector<1x256x256xbf16> to vector<256x256xbf16>
    %59 = vector.extract_strided_slice %2 {offsets = [5, 0], sizes = [1, 256], strides = [1, 1]} : vector<8x256xf32> to vector<1x256xf32>
    %60 = arith.truncf %56 : vector<8x256xf32> to vector<8x256xbf16>
    %cst_30 = arith.constant dense<0.000000e+00> : vector<8x256xf32>
    %61 = tpu.matmul %60, %58, %cst_30 {dimension_numbers = #tpu.dot_dimension_numbers<[1], [0], [0], [1], [0, 0, 1, 1], [], []>} : vector<8x256xbf16>, vector<256x256xbf16>, vector<8x256xf32> -> vector<8x256xf32>
    %62 = vector.broadcast %59 : vector<1x256xf32> to vector<8x256xf32>
    %63 = arith.addf %61, %62 : vector<8x256xf32>
    %cst_31 = arith.constant 0.000000e+00 : f32
    %64 = vector.broadcast %cst_31 : f32 to vector<8x256xf32>
    %65 = arith.maximumf %63, %64 : vector<8x256xf32>
    %c2_32 = arith.constant 2 : index
    %c0_33 = arith.constant 0 : index
    %c0_34 = arith.constant 0 : index
    %66 = vector.load %arg4[%c2_32, %c0_33, %c0_34] : memref<4x256x256xbf16, #tpu.memory_space<vmem>>, vector<1x256x128xbf16>
    %67 = vector.shape_cast %66 : vector<1x256x128xbf16> to vector<256x128xbf16>
    %68 = vector.extract_strided_slice %2 {offsets = [6, 0], sizes = [1, 128], strides = [1, 1]} : vector<8x256xf32> to vector<1x128xf32>
    %69 = arith.truncf %65 : vector<8x256xf32> to vector<8x256xbf16>
    %cst_35 = arith.constant dense<0.000000e+00> : vector<8x128xf32>
    %70 = tpu.matmul %69, %67, %cst_35 {dimension_numbers = #tpu.dot_dimension_numbers<[1], [0], [0], [1], [0, 0, 1, 1], [], []>} : vector<8x256xbf16>, vector<256x128xbf16>, vector<8x128xf32> -> vector<8x128xf32>
    %71 = vector.broadcast %68 : vector<1x128xf32> to vector<8x128xf32>
    %72 = arith.addf %70, %71 : vector<8x128xf32>
    %cst_36 = arith.constant 0.000000e+00 : f32
    %73 = vector.broadcast %cst_36 : f32 to vector<8x128xf32>
    %74 = arith.maximumf %72, %73 : vector<8x128xf32>
    %75 = arith.truncf %74 : vector<8x128xf32> to vector<8x128xbf16>
    %c3_37 = arith.constant 3 : index
    %c0_38 = arith.constant 0 : index
    %c0_39 = arith.constant 0 : index
    %76 = vector.load %arg4[%c3_37, %c0_38, %c0_39] : memref<4x256x256xbf16, #tpu.memory_space<vmem>>, vector<1x128x128xbf16>
    %77 = vector.shape_cast %76 : vector<1x128x128xbf16> to vector<128x128xbf16>
    %cst_40 = arith.constant dense<0.000000e+00> : vector<8x128xf32>
    %78 = tpu.matmul %75, %77, %cst_40 {dimension_numbers = #tpu.dot_dimension_numbers<[1], [0], [0], [1], [0, 0, 1, 1], [], []>} : vector<8x128xbf16>, vector<128x128xbf16>, vector<8x128xf32> -> vector<8x128xf32>
    %79 = vector.extract_strided_slice %2 {offsets = [7, 0], sizes = [1, 128], strides = [1, 1]} : vector<8x256xf32> to vector<1x128xf32>
    %80 = vector.broadcast %79 : vector<1x128xf32> to vector<8x128xf32>
    %81 = arith.addf %78, %80 : vector<8x128xf32>
    %82 = math.tanh %81 : vector<8x128xf32>
    %c0_41 = arith.constant 0 : index
    %c0_42 = arith.constant 0 : index
    %83 = vector.load %arg6[%c0_41, %c0_42] : memref<8x128xf32, #tpu.memory_space<vmem>>, vector<8x128xf32>
    tpu.vector_store %arg6[%c0_41, %c0_42], %82 {strides = array<i32>} : memref<8x128xf32, #tpu.memory_space<vmem>>, vector<8x128xf32>,
    return
  }
  func.func @transform_0(%arg0: i32) -> (i32, i32) {
    %c0_i32 = arith.constant 0 : i32
    %c0_i32_0 = arith.constant 0 : i32
    return %arg0, %c0_i32 : i32, i32
  }
  func.func @transform_1(%arg0: i32) -> (i32, i32) {
    %c0_i32 = arith.constant 0 : i32
    %c0_i32_0 = arith.constant 0 : i32
    return %arg0, %c0_i32 : i32, i32
  }
  func.func @transform_2(%arg0: i32) -> (i32, i32, i32) {
    %c0_i32 = arith.constant 0 : i32
    %c0_i32_0 = arith.constant 0 : i32
    %c0_i32_1 = arith.constant 0 : i32
    %c0_i32_2 = arith.constant 0 : i32
    return %c0_i32, %c0_i32_0, %c0_i32_1 : i32, i32, i32
  }
  func.func @transform_3(%arg0: i32) -> (i32, i32, i32) {
    %c0_i32 = arith.constant 0 : i32
    %c0_i32_0 = arith.constant 0 : i32
    %c0_i32_1 = arith.constant 0 : i32
    %c0_i32_2 = arith.constant 0 : i32
    return %c0_i32, %c0_i32_0, %c0_i32_1 : i32, i32, i32
  }
  func.func @transform_4(%arg0: i32) -> (i32, i32) {
    %c0_i32 = arith.constant 0 : i32
    %c0_i32_0 = arith.constant 0 : i32
    %c0_i32_1 = arith.constant 0 : i32
    return %c0_i32, %c0_i32_0 : i32, i32
  }
  func.func @transform_5(%arg0: i32) -> (i32, i32) {
    %c0_i32 = arith.constant 0 : i32
    %c0_i32_0 = arith.constant 0 : i32
    return %arg0, %c0_i32 : i32, i32
  }
}

</mosaic_0001>

<llo_original>
// kernel: tpu_custom_call.1
$region0: #{tpu_custom_call.1}
  #allocation0 [shape = 'u32[]', space=smem, size = 0x4, offset = 0x4, fixed_abs, tag = 'smem constant byte address 0x4 - core index']
  #allocation1 [shape = 'u32[144,128]{1,0:T(1,128)}', space=vmem, size = 0x12000, scoped, tag = 'internal scratch']
  %s0 = inlined_call_operand.hbm [shape: f32[8,32], index: 0, kind: input, shape index: {}]
  %s1 = inlined_call_operand.hbm [shape: f32[8,16], index: 1, kind: input, shape index: {}]
  %s2 = inlined_call_operand.hbm [shape: bf16[4,128,128], index: 2, kind: input, shape index: {}]
  %s3 = inlined_call_operand.hbm [shape: bf16[4,256,256], index: 3, kind: input, shape index: {}]
  %s4 = inlined_call_operand.hbm [shape: f32[8,256], index: 4, kind: input, shape index: {}]
  %s5 = inlined_call_operand.hbm [shape: f32[8,128], index: 5, kind: output, shape index: {}]
  %s6 = sld [smem:[#allocation0]]
  $region50: #{tpu_custom_call.1} parent=0
    _
  %s8 = ssub.s32 1, %s6
  %s9 = scalar_select 0, %s8, %s6
  $region1: #{tpu_custom_call.1} parent=0
    #allocation2 [shape = 'u8[4096]{0}', space=vmem, size = 0x1000, scoped, tag = 'input window, operand 0, single buffered']
    #allocation3 [shape = 's32[1]{0}', space=sflag, size = 0x4, scoped, tag = 'scoped memory for tpu_custom_call.1']
    #allocation4 [shape = 's32[1]{0}', space=sflag, size = 0x4, scoped, tag = 'scoped memory for tpu_custom_call.1']
    #allocation5 [shape = 'u8[4096]{0}', space=vmem, size = 0x1000, scoped, tag = 'input window, operand 1, single buffered']
    #allocation6 [shape = 's32[1]{0}', space=sflag, size = 0x4, scoped, tag = 'scoped memory for tpu_custom_call.1']
    #allocation7 [shape = 'u8[131072]{0}', space=vmem, size = 0x20000, scoped, tag = 'input window, operand 2, single buffered']
    #allocation8 [shape = 'u8[524288]{0}', space=vmem, size = 0x80000, scoped, tag = 'input window, operand 3, single buffered']
    #allocation9 [shape = 's32[1]{0}', space=sflag, size = 0x4, scoped, tag = 'scoped memory for tpu_custom_call.1']
    #allocation10 [shape = 'u8[8192]{0}', space=vmem, size = 0x2000, scoped, tag = 'input window, operand 4, single buffered']
    #allocation11 [shape = 'u8[4096]{0}', space=vmem, size = 0x1000, scoped, tag = 'output window, operand 0, single buffered']
    %10 = vsyncpa [#allocation3], 0
    %11 = vsyncpa [#allocation6], 0
    %12 = vsyncpa [#allocation9], 0
    %13 = vsyncpa [#allocation4], 0
    // Predicated region
    $region2: #{tpu_custom_call.1} parent=1 // pred_check
      _
    $region3: #{tpu_custom_call.1} parent=1 // pred_check_branch
      %15 = sbr.rel (0) target = $region5
    $region4: #{tpu_custom_call.1} parent=1 // pred_region
      %s17 = ssub.s32 128, 128
      %18 = vsyncadd [#allocation3], %s17
      %s20 = sshll.u32 [#allocation2], 4
      %s21 = int_to_ptr.vmem [resolvable:$true] %s20
      %23 = dma.hbm_to_vmem [thread:$0]  %s0, 128, %s21, [#allocation3]
    $region5: #{tpu_custom_call.1} parent=1 // pred_fallthru
      _
    // Predicated region
    $region6: #{tpu_custom_call.1} parent=1 // pred_check
      _
    $region7: #{tpu_custom_call.1} parent=1 // pred_check_branch
      %25 = sbr.rel (0) target = $region9
    $region8: #{tpu_custom_call.1} parent=1 // pred_region
      %s27 = ssub.s32 128, 128
      %28 = vsyncadd [#allocation6], %s27
      %s30 = sshll.u32 [#allocation5], 4
      %s31 = int_to_ptr.vmem [resolvable:$true] %s30
      %33 = dma.hbm_to_vmem [thread:$0]  %s1, 128, %s31, [#allocation6]
    $region9: #{tpu_custom_call.1} parent=1 // pred_fallthru
      _
    // Predicated region
    $region10: #{tpu_custom_call.1} parent=1 // pred_check
      _
    $region11: #{tpu_custom_call.1} parent=1 // pred_check_branch
      %35 = sbr.rel (0) target = $region13
    $region12: #{tpu_custom_call.1} parent=1 // pred_region
      %s37 = ssub.s32 4096, 4096
      %38 = vsyncadd [#allocation6], %s37
      %s39 = sshll.u32 [#allocation7], 4
      %s40 = int_to_ptr.vmem [resolvable:$true] %s39
      %45 = dma.hbm_to_vmem [thread:$0]  %s2, 4096, %s40, [#allocation6], 64, 64, 4
    $region13: #{tpu_custom_call.1} parent=1 // pred_fallthru
      _
    // Predicated region
    $region14: #{tpu_custom_call.1} parent=1 // pred_check
      _
    $region15: #{tpu_custom_call.1} parent=1 // pred_check_branch
      %47 = sbr.rel (0) target = $region17
    $region16: #{tpu_custom_call.1} parent=1 // pred_region
      %s49 = ssub.s32 16384, 16384
      %50 = vsyncadd [#allocation9], %s49
      %s51 = sshll.u32 [#allocation8], 4
      %s52 = int_to_ptr.vmem [resolvable:$true] %s51
      %57 = dma.hbm_to_vmem [thread:$0]  %s3, 16384, %s52, [#allocation9], 128, 128, 8
    $region17: #{tpu_custom_call.1} parent=1 // pred_fallthru
      _
    // Predicated region
    $region18: #{tpu_custom_call.1} parent=1 // pred_check
      _
    $region19: #{tpu_custom_call.1} parent=1 // pred_check_branch
      %59 = sbr.rel (0) target = $region21
    $region20: #{tpu_custom_call.1} parent=1 // pred_region
      %s61 = ssub.s32 256, 256
      %62 = vsyncadd [#allocation9], %s61
      %s64 = sshll.u32 [#allocation10], 4
      %s65 = int_to_ptr.vmem [resolvable:$true] %s64
      %67 = dma.hbm_to_vmem [thread:$0]  %s4, 256, %s65, [#allocation9]
    $region21: #{tpu_custom_call.1} parent=1 // pred_fallthru
      _
    // Predicated region
    $region22: #{tpu_custom_call.1} parent=1 // pred_check
      _
    $region23: #{tpu_custom_call.1} parent=1 // pred_check_branch
      %69 = sbr.rel (0) target = $region25
    $region24: #{tpu_custom_call.1} parent=1 // pred_region
      %70 = dma.done [#allocation3], 128
    $region25: #{tpu_custom_call.1} parent=1 // pred_fallthru
      _
    // Predicated region
    $region26: #{tpu_custom_call.1} parent=1 // pred_check
      _
    $region27: #{tpu_custom_call.1} parent=1 // pred_check_branch
      %72 = sbr.rel (0) target = $region29
    $region28: #{tpu_custom_call.1} parent=1 // pred_region
      %73 = dma.done [#allocation6], 128
    $region29: #{tpu_custom_call.1} parent=1 // pred_fallthru
      _
    // Predicated region
    $region30: #{tpu_custom_call.1} parent=1 // pred_check
      _
    $region31: #{tpu_custom_call.1} parent=1 // pred_check_branch
      %75 = sbr.rel (0) target = $region33
    $region32: #{tpu_custom_call.1} parent=1 // pred_region
      %76 = dma.done [#allocation6], 4096
    $region33: #{tpu_custom_call.1} parent=1 // pred_fallthru
      _
    // Predicated region
    $region34: #{tpu_custom_call.1} parent=1 // pred_check
      _
    $region35: #{tpu_custom_call.1} parent=1 // pred_check_branch
      %78 = sbr.rel (0) target = $region37
    $region36: #{tpu_custom_call.1} parent=1 // pred_region
      %79 = dma.done [#allocation9], 16384
    $region37: #{tpu_custom_call.1} parent=1 // pred_fallthru
      _
    // Predicated region
    $region38: #{tpu_custom_call.1} parent=1 // pred_check
      _
    $region39: #{tpu_custom_call.1} parent=1 // pred_check_branch
      %81 = sbr.rel (0) target = $region41
    $region40: #{tpu_custom_call.1} parent=1 // pred_region
      %82 = dma.done [#allocation9], 256
    $region41: #{tpu_custom_call.1} parent=1 // pred_fallthru
      _
    %v84 = vld [vmem:[#allocation2] sm:$0xff]
    %v85 = vld [vmem:[#allocation5] sm:$0xff]
    %v86 = vld [vmem:[#allocation10] sm:$0xff]
    %v87 = vld [vmem:[#allocation10 + $0x8] sm:$0xff]
    %v88 = vld [vmem:[#allocation7] sm:$0xf]
    %v89 = vld [vmem:[#allocation7 + $0x4] sm:$0xf]
    %v90 = vld [vmem:[#allocation7 + $0x8] sm:$0xf]
    %v91 = vld [vmem:[#allocation7 + $0xc] sm:$0xf]
    %v92 = vpack.c.bf16 %v84, %v84
    %v93 = vlaneseq
    %v94 = vshrl.u32 %v93, 7
    %v95 = vsub.s32 0, %v94
    %v96 = vrot.slane %v86, %v95
    %v101 = vunpack.c.l.b16 %v88
    %v102 = vunpack.c.l.b16 %v89
    %v103 = vunpack.c.l.b16 %v90
    %v104 = vunpack.c.l.b16 %v91
    %v105 = vpack.c.b16 %v102, %v101
    %v106 = vpack.c.b16 %v104, %v103
    %vm109 = vcmask 261120
    %v111 = vsel %vm109, %v92, 0
    %113 = vmatprep.subr.bf16.mxu0 0
    %114 = vmatpush1.bf16.msra.mxu0 0
    %115 = vmatprep.subr.bf16.mxu0 0
    %116 = vmatpush1.bf16.msra.mxu0 0
    %117 = vmatprep.subr.bf16.mxu0 0
    %118 = vmatpush1.bf16.msra.mxu0 0
    %119 = vmatprep.subr.bf16.mxu0 0
    %120 = vmatpush1.bf16.msra.mxu0 0
    %121 = vmatprep.subr.bf16.mxu0 0
    %122 = vmatpush1.bf16.msra.mxu0 0
    %123 = vmatprep.subr.bf16.mxu0 0
    %124 = vmatpush1.bf16.msra.mxu0 0
    %125 = vmatprep.subr.bf16.mxu0 0
    %126 = vmatpush1.bf16.msra.mxu0 %v106
    %127 = vmatprep.subr.bf16.mxu0 0
    %128 = vmatpush1.bf16.msra.mxu0 %v105
    %129 = vmatprep.subr.bf16.mxu0 0
    %130 = vmatpush2.bf16.msra.mxu0 0
    %131 = vmatprep.subr.bf16.mxu0 0
    %132 = vmatpush2.bf16.msra.mxu0 0
    %133 = vmatprep.subr.bf16.mxu0 0
    %134 = vmatpush2.bf16.msra.mxu0 0
    %135 = vmatprep.subr.bf16.mxu0 0
    %136 = vmatpush2.bf16.msra.mxu0 0
    %137 = vmatprep.subr.bf16.mxu0 0
    %138 = vmatpush2.bf16.msra.mxu0 0
    %139 = vmatprep.subr.bf16.mxu0 0
    %140 = vmatpush2.bf16.msra.mxu0 0
    %141 = vmatprep.subr.bf16.mxu0 0
    %142 = vmatpush2.bf16.msra.mxu0 0
    %143 = vmatprep.subr.bf16.mxu0 0
    %144 = vmatpush2.bf16.msra.mxu0 0
    %145 = vmatprep.mubr.bf16.mxu0 0
    %146 = vmatmul.mubr.bf16.gmra.mxu0 %v111
    %v147 = vpop.f32.mrf.mxu0
    %v148 = vadd.f32 %v96, %v147
    %v149 = vpop.f32.mrf.mxu0
    %v150 = vpop.f32.mrf.mxu0
    %v151 = vpop.f32.mrf.mxu0
    %152 = vdwg.mxu0
    %v153 = vmax.f32 %v148, 0.0
    %s154 = scalar_lea.vmem [#allocation7], 64
    %v155 = vld [vmem:[%s154] sm:$0xf]
    %v156 = vld [vmem:[%s154 + $0x4] sm:$0xf]
    %v157 = vld [vmem:[%s154 + $0x8] sm:$0xf]
    %v158 = vld [vmem:[%s154 + $0xc] sm:$0xf]
    %v159 = vld [vmem:[%s154 + $0x10] sm:$0xf]
    %v160 = vld [vmem:[%s154 + $0x14] sm:$0xf]
    %v161 = vld [vmem:[%s154 + $0x18] sm:$0xf]
    %v162 = vld [vmem:[%s154 + $0x1c] sm:$0xf]
    %v163 = vld [vmem:[%s154 + $0x20] sm:$0xf]
    %v164 = vld [vmem:[%s154 + $0x24] sm:$0xf]
    %v165 = vld [vmem:[%s154 + $0x28] sm:$0xf]
    %v166 = vld [vmem:[%s154 + $0x2c] sm:$0xf]
    %v167 = vld [vmem:[%s154 + $0x30] sm:$0xf]
    %v168 = vld [vmem:[%s154 + $0x34] sm:$0xf]
    %v169 = vld [vmem:[%s154 + $0x38] sm:$0xf]
    %v170 = vld [vmem:[%s154 + $0x3c] sm:$0xf]
    %v171 = vpack.c.bf16 %v153, %v153
    %v172 = vlaneseq
    %v173 = vshrl.u32 %v172, 7
    %v174 = vsub.s32 1, %v173
    %v175 = vrot.slane %v86, %v174
    %v192 = vunpack.c.l.b16 %v155
    %v193 = vunpack.c.l.b16 %v156
    %v194 = vunpack.c.l.b16 %v157
    %v195 = vunpack.c.l.b16 %v158
    %v196 = vunpack.c.l.b16 %v159
    %v197 = vunpack.c.l.b16 %v160
    %v198 = vunpack.c.l.b16 %v161
    %v199 = vunpack.c.l.b16 %v162
    %v200 = vunpack.c.l.b16 %v163
    %v201 = vunpack.c.l.b16 %v164
    %v202 = vunpack.c.l.b16 %v165
    %v203 = vunpack.c.l.b16 %v166
    %v204 = vunpack.c.l.b16 %v167
    %v205 = vunpack.c.l.b16 %v168
    %v206 = vunpack.c.l.b16 %v169
    %v207 = vunpack.c.l.b16 %v170
    %v208 = vpack.c.b16 %v193, %v192
    %v209 = vpack.c.b16 %v195, %v194
    %v210 = vpack.c.b16 %v197, %v196
    %v211 = vpack.c.b16 %v199, %v198
    %v212 = vpack.c.b16 %v201, %v200
    %v213 = vpack.c.b16 %v203, %v202
    %v214 = vpack.c.b16 %v205, %v204
    %v215 = vpack.c.b16 %v207, %v206
    %224 = vmatprep.subr.bf16.mxu0 0
    %225 = vmatpush1.bf16.msra.mxu0 %v215
    %226 = vmatprep.subr.bf16.mxu0 0
    %227 = vmatpush1.bf16.msra.mxu0 %v214
    %228 = vmatprep.subr.bf16.mxu0 0
    %229 = vmatpush1.bf16.msra.mxu0 %v213
    %230 = vmatprep.subr.bf16.mxu0 0
    %231 = vmatpush1.bf16.msra.mxu0 %v212
    %232 = vmatprep.subr.bf16.mxu0 0
    %233 = vmatpush1.bf16.msra.mxu0 %v211
    %234 = vmatprep.subr.bf16.mxu0 0
    %235 = vmatpush1.bf16.msra.mxu0 %v210
    %236 = vmatprep.subr.bf16.mxu0 0
    %237 = vmatpush1.bf16.msra.mxu0 %v209
    %238 = vmatprep.subr.bf16.mxu0 0
    %239 = vmatpush1.bf16.msra.mxu0 %v208
    %240 = vmatprep.subr.bf16.mxu0 0
    %241 = vmatpush2.bf16.msra.mxu0 0
    %242 = vmatprep.subr.bf16.mxu0 0
    %243 = vmatpush2.bf16.msra.mxu0 0
    %244 = vmatprep.subr.bf16.mxu0 0
    %245 = vmatpush2.bf16.msra.mxu0 0
    %246 = vmatprep.subr.bf16.mxu0 0
    %247 = vmatpush2.bf16.msra.mxu0 0
    %248 = vmatprep.subr.bf16.mxu0 0
    %249 = vmatpush2.bf16.msra.mxu0 0
    %250 = vmatprep.subr.bf16.mxu0 0
    %251 = vmatpush2.bf16.msra.mxu0 0
    %252 = vmatprep.subr.bf16.mxu0 0
    %253 = vmatpush2.bf16.msra.mxu0 0
    %254 = vmatprep.subr.bf16.mxu0 0
    %255 = vmatpush2.bf16.msra.mxu0 0
    %256 = vmatprep.mubr.bf16.mxu0 0
    %257 = vmatmul.mubr.bf16.gmra.mxu0 %v171
    %v258 = vpop.f32.mrf.mxu0
    %v259 = vadd.f32 %v175, %v258
    %v260 = vpop.f32.mrf.mxu0
    %v261 = vpop.f32.mrf.mxu0
    %v262 = vpop.f32.mrf.mxu0
    %263 = vdwg.mxu0
    %v264 = vmax.f32 %v259, 0.0
    %s265 = scalar_lea.vmem [#allocation7], 128
    %v266 = vld [vmem:[%s265] sm:$0xf]
    %v267 = vld [vmem:[%s265 + $0x4] sm:$0xf]
    %v268 = vld [vmem:[%s265 + $0x8] sm:$0xf]
    %v269 = vld [vmem:[%s265 + $0xc] sm:$0xf]
    %v270 = vld [vmem:[%s265 + $0x10] sm:$0xf]
    %v271 = vld [vmem:[%s265 + $0x14] sm:$0xf]
    %v272 = vld [vmem:[%s265 + $0x18] sm:$0xf]
    %v273 = vld [vmem:[%s265 + $0x1c] sm:$0xf]
    %v274 = vld [vmem:[%s265 + $0x20] sm:$0xf]
    %v275 = vld [vmem:[%s265 + $0x24] sm:$0xf]
    %v276 = vld [vmem:[%s265 + $0x28] sm:$0xf]
    %v277 = vld [vmem:[%s265 + $0x2c] sm:$0xf]
    %v278 = vld [vmem:[%s265 + $0x30] sm:$0xf]
    %v279 = vld [vmem:[%s265 + $0x34] sm:$0xf]
    %v280 = vld [vmem:[%s265 + $0x38] sm:$0xf]
    %v281 = vld [vmem:[%s265 + $0x3c] sm:$0xf]
    %v282 = vpack.c.bf16 %v264, %v264
    %v283 = vlaneseq
    %v284 = vshrl.u32 %v283, 7
    %v285 = vsub.s32 2, %v284
    %v286 = vrot.slane %v86, %v285
    %v303 = vunpack.c.l.b16 %v266
    %v304 = vunpack.c.l.b16 %v267
    %v305 = vunpack.c.l.b16 %v268
    %v306 = vunpack.c.l.b16 %v269
    %v307 = vunpack.c.l.b16 %v270
    %v308 = vunpack.c.l.b16 %v271
    %v309 = vunpack.c.l.b16 %v272
    %v310 = vunpack.c.l.b16 %v273
    %v311 = vunpack.c.l.b16 %v274
    %v312 = vunpack.c.l.b16 %v275
    %v313 = vunpack.c.l.b16 %v276
    %v314 = vunpack.c.l.b16 %v277
    %v315 = vunpack.c.l.b16 %v278
    %v316 = vunpack.c.l.b16 %v279
    %v317 = vunpack.c.l.b16 %v280
    %v318 = vunpack.c.l.b16 %v281
    %v319 = vpack.c.b16 %v304, %v303
    %v320 = vpack.c.b16 %v306, %v305
    %v321 = vpack.c.b16 %v308, %v307
    %v322 = vpack.c.b16 %v310, %v309
    %v323 = vpack.c.b16 %v312, %v311
    %v324 = vpack.c.b16 %v314, %v313
    %v325 = vpack.c.b16 %v316, %v315
    %v326 = vpack.c.b16 %v318, %v317
    %335 = vmatprep.subr.bf16.mxu0 0
    %336 = vmatpush1.bf16.msra.mxu0 %v326
    %337 = vmatprep.subr.bf16.mxu0 0
    %338 = vmatpush1.bf16.msra.mxu0 %v325
    %339 = vmatprep.subr.bf16.mxu0 0
    %340 = vmatpush1.bf16.msra.mxu0 %v324
    %341 = vmatprep.subr.bf16.mxu0 0
    %342 = vmatpush1.bf16.msra.mxu0 %v323
    %343 = vmatprep.subr.bf16.mxu0 0
    %344 = vmatpush1.bf16.msra.mxu0 %v322
    %345 = vmatprep.subr.bf16.mxu0 0
    %346 = vmatpush1.bf16.msra.mxu0 %v321
    %347 = vmatprep.subr.bf16.mxu0 0
    %348 = vmatpush1.bf16.msra.mxu0 %v320
    %349 = vmatprep.subr.bf16.mxu0 0
    %350 = vmatpush1.bf16.msra.mxu0 %v319
    %351 = vmatprep.subr.bf16.mxu0 0
    %352 = vmatpush2.bf16.msra.mxu0 0
    %353 = vmatprep.subr.bf16.mxu0 0
    %354 = vmatpush2.bf16.msra.mxu0 0
    %355 = vmatprep.subr.bf16.mxu0 0
    %356 = vmatpush2.bf16.msra.mxu0 0
    %357 = vmatprep.subr.bf16.mxu0 0
    %358 = vmatpush2.bf16.msra.mxu0 0
    %359 = vmatprep.subr.bf16.mxu0 0
    %360 = vmatpush2.bf16.msra.mxu0 0
    %361 = vmatprep.subr.bf16.mxu0 0
    %362 = vmatpush2.bf16.msra.mxu0 0
    %363 = vmatprep.subr.bf16.mxu0 0
    %364 = vmatpush2.bf16.msra.mxu0 0
    %365 = vmatprep.subr.bf16.mxu0 0
    %366 = vmatpush2.bf16.msra.mxu0 0
    %367 = vmatprep.mubr.bf16.mxu0 0
    %368 = vmatmul.mubr.bf16.gmra.mxu0 %v282
    %v369 = vpop.f32.mrf.mxu0
    %v370 = vadd.f32 %v286, %v369
    %v371 = vpop.f32.mrf.mxu0
    %v372 = vpop.f32.mrf.mxu0
    %v373 = vpop.f32.mrf.mxu0
    %374 = vdwg.mxu0
    %v375 = vmax.f32 %v370, 0.0
    %v376 = vpack.c.bf16 %v375, %v375
    %s377 = scalar_lea.vmem [#allocation7], 192
    %v378 = vld [vmem:[%s377] sm:$0xf]
    %v379 = vld [vmem:[%s377 + $0x4] sm:$0xf]
    %v380 = vld [vmem:[%s377 + $0x8] sm:$0xf]
    %v381 = vld [vmem:[%s377 + $0xc] sm:$0xf]
    %v382 = vld [vmem:[%s377 + $0x10] sm:$0xf]
    %v383 = vld [vmem:[%s377 + $0x14] sm:$0xf]
    %v384 = vld [vmem:[%s377 + $0x18] sm:$0xf]
    %v385 = vld [vmem:[%s377 + $0x1c] sm:$0xf]
    %v386 = vld [vmem:[%s377 + $0x20] sm:$0xf]
    %v387 = vld [vmem:[%s377 + $0x24] sm:$0xf]
    %v388 = vld [vmem:[%s377 + $0x28] sm:$0xf]
    %v389 = vld [vmem:[%s377 + $0x2c] sm:$0xf]
    %v390 = vld [vmem:[%s377 + $0x30] sm:$0xf]
    %v391 = vld [vmem:[%s377 + $0x34] sm:$0xf]
    %v392 = vld [vmem:[%s377 + $0x38] sm:$0xf]
    %v393 = vld [vmem:[%s377 + $0x3c] sm:$0xf]
    %v394 = vlaneseq
    %v395 = vshrl.u32 %v394, 7
    %v396 = vsub.s32 3, %v395
    %v397 = vrot.slane %v86, %v396
    %v414 = vunpack.c.l.b16 %v378
    %v415 = vunpack.c.l.b16 %v379
    %v416 = vunpack.c.l.b16 %v380
    %v417 = vunpack.c.l.b16 %v381
    %v418 = vunpack.c.l.b16 %v382
    %v419 = vunpack.c.l.b16 %v383
    %v420 = vunpack.c.l.b16 %v384
    %v421 = vunpack.c.l.b16 %v385
    %v422 = vunpack.c.l.b16 %v386
    %v423 = vunpack.c.l.b16 %v387
    %v424 = vunpack.c.l.b16 %v388
    %v425 = vunpack.c.l.b16 %v389
    %v426 = vunpack.c.l.b16 %v390
    %v427 = vunpack.c.l.b16 %v391
    %v428 = vunpack.c.l.b16 %v392
    %v429 = vunpack.c.l.b16 %v393
    %v430 = vpack.c.b16 %v415, %v414
    %v431 = vpack.c.b16 %v417, %v416
    %v432 = vpack.c.b16 %v419, %v418
    %v433 = vpack.c.b16 %v421, %v420
    %v434 = vpack.c.b16 %v423, %v422
    %v435 = vpack.c.b16 %v425, %v424
    %v436 = vpack.c.b16 %v427, %v426
    %v437 = vpack.c.b16 %v429, %v428
    %446 = vmatprep.subr.bf16.mxu0 0
    %447 = vmatpush1.bf16.msra.mxu0 %v437
    %448 = vmatprep.subr.bf16.mxu0 0
    %449 = vmatpush1.bf16.msra.mxu0 %v436
    %450 = vmatprep.subr.bf16.mxu0 0
    %451 = vmatpush1.bf16.msra.mxu0 %v435
    %452 = vmatprep.subr.bf16.mxu0 0
    %453 = vmatpush1.bf16.msra.mxu0 %v434
    %454 = vmatprep.subr.bf16.mxu0 0
    %455 = vmatpush1.bf16.msra.mxu0 %v433
    %456 = vmatprep.subr.bf16.mxu0 0
    %457 = vmatpush1.bf16.msra.mxu0 %v432
    %458 = vmatprep.subr.bf16.mxu0 0
    %459 = vmatpush1.bf16.msra.mxu0 %v431
    %460 = vmatprep.subr.bf16.mxu0 0
    %461 = vmatpush1.bf16.msra.mxu0 %v430
    %462 = vmatprep.subr.bf16.mxu0 0
    %463 = vmatpush2.bf16.msra.mxu0 0
    %464 = vmatprep.subr.bf16.mxu0 0
    %465 = vmatpush2.bf16.msra.mxu0 0
    %466 = vmatprep.subr.bf16.mxu0 0
    %467 = vmatpush2.bf16.msra.mxu0 0
    %468 = vmatprep.subr.bf16.mxu0 0
    %469 = vmatpush2.bf16.msra.mxu0 0
    %470 = vmatprep.subr.bf16.mxu0 0
    %471 = vmatpush2.bf16.msra.mxu0 0
    %472 = vmatprep.subr.bf16.mxu0 0
    %473 = vmatpush2.bf16.msra.mxu0 0
    %474 = vmatprep.subr.bf16.mxu0 0
    %475 = vmatpush2.bf16.msra.mxu0 0
    %476 = vmatprep.subr.bf16.mxu0 0
    %477 = vmatpush2.bf16.msra.mxu0 0
    %478 = vmatprep.mubr.bf16.mxu0 0
    %479 = vmatmul.mubr.bf16.gmra.mxu0 %v376
    %v480 = vpop.f32.mrf.mxu0
    %v481 = vadd.f32 %v397, %v480
    %v482 = vpop.f32.mrf.mxu0
    %v483 = vpop.f32.mrf.mxu0
    %v484 = vpop.f32.mrf.mxu0
    %485 = vdwg.mxu0
    %vm486 = vcmask 130048
    %v487 = vsel %vm486, %v481, -inf
    %488 = vmax.xlane.f32.xlu0 %v487
    %v489 = vpop.xlane.xlu0 %488
    %v490 = vsub.f32 %v481, %v489
    %v491 = vmul.f32 %v490, 1.442695
    %v492 = vpow.pop %v491
    %v493 = vsel %vm486, %v492, 0.0
    %494 = vadd.xlane.f32.xlu0 %v493
    %v495 = vpop.xlane.xlu0 %494
    %v496 = vrcp.pop %v495
    %v497 = vmul.f32 %v492, %v496
    %v498 = vmul.f32 %v497, %v85
    %v499 = vld [vmem:[#allocation8] sm:$0xff]
    %v500 = vld [vmem:[#allocation8 + $0x8] sm:$0xff]
    %v501 = vpack.c.bf16 %v498, %v498
    %v502 = vlaneseq
    %v503 = vshrl.u32 %v502, 7
    %v504 = vsub.s32 4, %v503
    %v505 = vrot.slane %v86, %v504
    %v506 = vlaneseq
    %v507 = vshrl.u32 %v506, 7
    %v508 = vsub.s32 4, %v507
    %v509 = vrot.slane %v87, %v508
    %v512 = vunpack.c.l.b16 %v499
    %v513 = vunpack.c.h.b16 %v499
    %v514 = vunpack.c.l.b16 %v500
    %v515 = vunpack.c.h.b16 %v500
    %v516 = vpack.c.b16 %v514, %v512
    %v517 = vpack.c.b16 %v515, %v513
    %v521 = vsel %vm486, %v501, 0
    %523 = vmatprep.subr.bf16.mxu0 0
    %524 = vmatpush1.bf16.msra.mxu0 0
    %525 = vmatprep.subr.bf16.mxu0 0
    %526 = vmatpush1.bf16.msra.mxu0 0
    %527 = vmatprep.subr.bf16.mxu0 0
    %528 = vmatpush1.bf16.msra.mxu0 0
    %529 = vmatprep.subr.bf16.mxu0 0
    %530 = vmatpush1.bf16.msra.mxu0 0
    %531 = vmatprep.subr.bf16.mxu0 0
    %532 = vmatpush1.bf16.msra.mxu0 0
    %533 = vmatprep.subr.bf16.mxu0 0
    %534 = vmatpush1.bf16.msra.mxu0 0
    %535 = vmatprep.subr.bf16.mxu0 0
    %536 = vmatpush1.bf16.msra.mxu0 0
    %537 = vmatprep.subr.bf16.mxu0 %v517
    %538 = vmatpush1.bf16.msra.mxu0 %v516
    %539 = vmatprep.subr.bf16.mxu0 0
    %540 = vmatpush2.bf16.msra.mxu0 0
    %541 = vmatprep.subr.bf16.mxu0 0
    %542 = vmatpush2.bf16.msra.mxu0 0
    %543 = vmatprep.subr.bf16.mxu0 0
    %544 = vmatpush2.bf16.msra.mxu0 0
    %545 = vmatprep.subr.bf16.mxu0 0
    %546 = vmatpush2.bf16.msra.mxu0 0
    %547 = vmatprep.subr.bf16.mxu0 0
    %548 = vmatpush2.bf16.msra.mxu0 0
    %549 = vmatprep.subr.bf16.mxu0 0
    %550 = vmatpush2.bf16.msra.mxu0 0
    %551 = vmatprep.subr.bf16.mxu0 0
    %552 = vmatpush2.bf16.msra.mxu0 0
    %553 = vmatprep.subr.bf16.mxu0 0
    %554 = vmatpush2.bf16.msra.mxu0 0
    %555 = vmatprep.mubr.bf16.mxu0 0
    %556 = vmatmul.mubr.bf16.gmra.mxu0 %v521
    %v557 = vpop.f32.mrf.mxu0
    %v558 = vadd.f32 %v505, %v557
    %v559 = vpop.f32.mrf.mxu0
    %v560 = vadd.f32 %v509, %v559
    %v561 = vpop.f32.mrf.mxu0
    %v562 = vpop.f32.mrf.mxu0
    %563 = vdwg.mxu0
    %v564 = vmax.f32 %v558, 0.0
    %v565 = vmax.f32 %v560, 0.0
    %s566 = scalar_lea.vmem [#allocation8], 256
    %v567 = vld [vmem:[%s566] sm:$0xff]
    %v568 = vld [vmem:[%s566 + $0x8] sm:$0xff]
    %v569 = vld [vmem:[%s566 + $0x10] sm:$0xff]
    %v570 = vld [vmem:[%s566 + $0x18] sm:$0xff]
    %v571 = vld [vmem:[%s566 + $0x20] sm:$0xff]
    %v572 = vld [vmem:[%s566 + $0x28] sm:$0xff]
    %v573 = vld [vmem:[%s566 + $0x30] sm:$0xff]
    %v574 = vld [vmem:[%s566 + $0x38] sm:$0xff]
    %v575 = vld [vmem:[%s566 + $0x40] sm:$0xff]
    %v576 = vld [vmem:[%s566 + $0x48] sm:$0xff]
    %v577 = vld [vmem:[%s566 + $0x50] sm:$0xff]
    %v578 = vld [vmem:[%s566 + $0x58] sm:$0xff]
    %v579 = vld [vmem:[%s566 + $0x60] sm:$0xff]
    %v580 = vld [vmem:[%s566 + $0x68] sm:$0xff]
    %v581 = vld [vmem:[%s566 + $0x70] sm:$0xff]
    %v582 = vld [vmem:[%s566 + $0x78] sm:$0xff]
    %v583 = vld [vmem:[%s566 + $0x80] sm:$0xff]
    %v584 = vld [vmem:[%s566 + $0x88] sm:$0xff]
    %v585 = vld [vmem:[%s566 + $0x90] sm:$0xff]
    %v586 = vld [vmem:[%s566 + $0x98] sm:$0xff]
    %v587 = vld [vmem:[%s566 + $0xa0] sm:$0xff]
    %v588 = vld [vmem:[%s566 + $0xa8] sm:$0xff]
    %v589 = vld [vmem:[%s566 + $0xb0] sm:$0xff]
    %v590 = vld [vmem:[%s566 + $0xb8] sm:$0xff]
    %v591 = vld [vmem:[%s566 + $0xc0] sm:$0xff]
    %v592 = vld [vmem:[%s566 + $0xc8] sm:$0xff]
    %v593 = vld [vmem:[%s566 + $0xd0] sm:$0xff]
    %v594 = vld [vmem:[%s566 + $0xd8] sm:$0xff]
    %v595 = vld [vmem:[%s566 + $0xe0] sm:$0xff]
    %v596 = vld [vmem:[%s566 + $0xe8] sm:$0xff]
    %v597 = vld [vmem:[%s566 + $0xf0] sm:$0xff]
    %v598 = vld [vmem:[%s566 + $0xf8] sm:$0xff]
    %v599 = vpack.c.bf16 %v564, %v564
    %v600 = vpack.c.bf16 %v565, %v565
    %v601 = vlaneseq
    %v602 = vshrl.u32 %v601, 7
    %v603 = vsub.s32 5, %v602
    %v604 = vrot.slane %v86, %v603
    %v605 = vlaneseq
    %v606 = vshrl.u32 %v605, 7
    %v607 = vsub.s32 5, %v606
    %v608 = vrot.slane %v87, %v607
    %v641 = vunpack.c.l.b16 %v567
    %v642 = vunpack.c.h.b16 %v567
    %v643 = vunpack.c.l.b16 %v568
    %v644 = vunpack.c.h.b16 %v568
    %v645 = vunpack.c.l.b16 %v569
    %v646 = vunpack.c.h.b16 %v569
    %v647 = vunpack.c.l.b16 %v570
    %v648 = vunpack.c.h.b16 %v570
    %v649 = vunpack.c.l.b16 %v571
    %v650 = vunpack.c.h.b16 %v571
    %v651 = vunpack.c.l.b16 %v572
    %v652 = vunpack.c.h.b16 %v572
    %v653 = vunpack.c.l.b16 %v573
    %v654 = vunpack.c.h.b16 %v573
    %v655 = vunpack.c.l.b16 %v574
    %v656 = vunpack.c.h.b16 %v574
    %v657 = vunpack.c.l.b16 %v575
    %v658 = vunpack.c.h.b16 %v575
    %v659 = vunpack.c.l.b16 %v576
    %v660 = vunpack.c.h.b16 %v576
    %v661 = vunpack.c.l.b16 %v577
    %v662 = vunpack.c.h.b16 %v577
    %v663 = vunpack.c.l.b16 %v578
    %v664 = vunpack.c.h.b16 %v578
    %v665 = vunpack.c.l.b16 %v579
    %v666 = vunpack.c.h.b16 %v579
    %v667 = vunpack.c.l.b16 %v580
    %v668 = vunpack.c.h.b16 %v580
    %v669 = vunpack.c.l.b16 %v581
    %v670 = vunpack.c.h.b16 %v581
    %v671 = vunpack.c.l.b16 %v582
    %v672 = vunpack.c.h.b16 %v582
    %v673 = vunpack.c.l.b16 %v583
    %v674 = vunpack.c.h.b16 %v583
    %v675 = vunpack.c.l.b16 %v584
    %v676 = vunpack.c.h.b16 %v584
    %v677 = vunpack.c.l.b16 %v585
    %v678 = vunpack.c.h.b16 %v585
    %v679 = vunpack.c.l.b16 %v586
    %v680 = vunpack.c.h.b16 %v586
    %v681 = vunpack.c.l.b16 %v587
    %v682 = vunpack.c.h.b16 %v587
    %v683 = vunpack.c.l.b16 %v588
    %v684 = vunpack.c.h.b16 %v588
    %v685 = vunpack.c.l.b16 %v589
    %v686 = vunpack.c.h.b16 %v589
    %v687 = vunpack.c.l.b16 %v590
    %v688 = vunpack.c.h.b16 %v590
    %v689 = vunpack.c.l.b16 %v591
    %v690 = vunpack.c.h.b16 %v591
    %v691 = vunpack.c.l.b16 %v592
    %v692 = vunpack.c.h.b16 %v592
    %v693 = vunpack.c.l.b16 %v593
    %v694 = vunpack.c.h.b16 %v593
    %v695 = vunpack.c.l.b16 %v594
    %v696 = vunpack.c.h.b16 %v594
    %v697 = vunpack.c.l.b16 %v595
    %v698 = vunpack.c.h.b16 %v595
    %v699 = vunpack.c.l.b16 %v596
    %v700 = vunpack.c.h.b16 %v596
    %v701 = vunpack.c.l.b16 %v597
    %v702 = vunpack.c.h.b16 %v597
    %v703 = vunpack.c.l.b16 %v598
    %v704 = vunpack.c.h.b16 %v598
    %v705 = vpack.c.b16 %v643, %v641
    %v706 = vpack.c.b16 %v644, %v642
    %v707 = vpack.c.b16 %v647, %v645
    %v708 = vpack.c.b16 %v648, %v646
    %v709 = vpack.c.b16 %v651, %v649
    %v710 = vpack.c.b16 %v652, %v650
    %v711 = vpack.c.b16 %v655, %v653
    %v712 = vpack.c.b16 %v656, %v654
    %v713 = vpack.c.b16 %v659, %v657
    %v714 = vpack.c.b16 %v660, %v658
    %v715 = vpack.c.b16 %v663, %v661
    %v716 = vpack.c.b16 %v664, %v662
    %v717 = vpack.c.b16 %v667, %v665
    %v718 = vpack.c.b16 %v668, %v666
    %v719 = vpack.c.b16 %v671, %v669
    %v720 = vpack.c.b16 %v672, %v670
    %v721 = vpack.c.b16 %v675, %v673
    %v722 = vpack.c.b16 %v676, %v674
    %v723 = vpack.c.b16 %v679, %v677
    %v724 = vpack.c.b16 %v680, %v678
    %v725 = vpack.c.b16 %v683, %v681
    %v726 = vpack.c.b16 %v684, %v682
    %v727 = vpack.c.b16 %v687, %v685
    %v728 = vpack.c.b16 %v688, %v686
    %v729 = vpack.c.b16 %v691, %v689
    %v730 = vpack.c.b16 %v692, %v690
    %v731 = vpack.c.b16 %v695, %v693
    %v732 = vpack.c.b16 %v696, %v694
    %v733 = vpack.c.b16 %v699, %v697
    %v734 = vpack.c.b16 %v700, %v698
    %v735 = vpack.c.b16 %v703, %v701
    %v736 = vpack.c.b16 %v704, %v702
    %769 = vmatprep.subr.bf16.mxu0 %v720
    %770 = vmatpush1.bf16.msra.mxu0 %v719
    %771 = vmatprep.subr.bf16.mxu0 %v718
    %772 = vmatpush1.bf16.msra.mxu0 %v717
    %773 = vmatprep.subr.bf16.mxu0 %v716
    %774 = vmatpush1.bf16.msra.mxu0 %v715
    %775 = vmatprep.subr.bf16.mxu0 %v714
    %776 = vmatpush1.bf16.msra.mxu0 %v713
    %777 = vmatprep.subr.bf16.mxu0 %v712
    %778 = vmatpush1.bf16.msra.mxu0 %v711
    %779 = vmatprep.subr.bf16.mxu0 %v710
    %780 = vmatpush1.bf16.msra.mxu0 %v709
    %781 = vmatprep.subr.bf16.mxu0 %v708
    %782 = vmatpush1.bf16.msra.mxu0 %v707
    %783 = vmatprep.subr.bf16.mxu0 %v706
    %784 = vmatpush1.bf16.msra.mxu0 %v705
    %785 = vmatprep.subr.bf16.mxu0 %v736
    %786 = vmatpush2.bf16.msra.mxu0 %v735
    %787 = vmatprep.subr.bf16.mxu0 %v734
    %788 = vmatpush2.bf16.msra.mxu0 %v733
    %789 = vmatprep.subr.bf16.mxu0 %v732
    %790 = vmatpush2.bf16.msra.mxu0 %v731
    %791 = vmatprep.subr.bf16.mxu0 %v730
    %792 = vmatpush2.bf16.msra.mxu0 %v729
    %793 = vmatprep.subr.bf16.mxu0 %v728
    %794 = vmatpush2.bf16.msra.mxu0 %v727
    %795 = vmatprep.subr.bf16.mxu0 %v726
    %796 = vmatpush2.bf16.msra.mxu0 %v725
    %797 = vmatprep.subr.bf16.mxu0 %v724
    %798 = vmatpush2.bf16.msra.mxu0 %v723
    %799 = vmatprep.subr.bf16.mxu0 %v722
    %800 = vmatpush2.bf16.msra.mxu0 %v721
    %801 = vmatprep.mubr.bf16.mxu0 %v600
    %802 = vmatmul.mubr.bf16.gmra.mxu0 %v599
    %v803 = vpop.f32.mrf.mxu0
    %v804 = vadd.f32 %v604, %v803
    %v805 = vpop.f32.mrf.mxu0
    %v806 = vadd.f32 %v608, %v805
    %v807 = vpop.f32.mrf.mxu0
    %v808 = vpop.f32.mrf.mxu0
    %809 = vdwg.mxu0
    %v810 = vmax.f32 %v804, 0.0
    %v811 = vmax.f32 %v806, 0.0
    %s812 = scalar_lea.vmem [#allocation8], 512
    %v813 = vld [vmem:[%s812] sm:$0xf]
    %v814 = vld [vmem:[%s812 + $0x8] sm:$0xf]
    %v815 = vld [vmem:[%s812 + $0x10] sm:$0xf]
    %v816 = vld [vmem:[%s812 + $0x18] sm:$0xf]
    %v817 = vld [vmem:[%s812 + $0x20] sm:$0xf]
    %v818 = vld [vmem:[%s812 + $0x28] sm:$0xf]
    %v819 = vld [vmem:[%s812 + $0x30] sm:$0xf]
    %v820 = vld [vmem:[%s812 + $0x38] sm:$0xf]
    %v821 = vld [vmem:[%s812 + $0x40] sm:$0xf]
    %v822 = vld [vmem:[%s812 + $0x48] sm:$0xf]
    %v823 = vld [vmem:[%s812 + $0x50] sm:$0xf]
    %v824 = vld [vmem:[%s812 + $0x58] sm:$0xf]
    %v825 = vld [vmem:[%s812 + $0x60] sm:$0xf]
    %v826 = vld [vmem:[%s812 + $0x68] sm:$0xf]
    %v827 = vld [vmem:[%s812 + $0x70] sm:$0xf]
    %v828 = vld [vmem:[%s812 + $0x78] sm:$0xf]
    %v829 = vld [vmem:[%s812 + $0x80] sm:$0xf]
    %v830 = vld [vmem:[%s812 + $0x88] sm:$0xf]
    %v831 = vld [vmem:[%s812 + $0x90] sm:$0xf]
    %v832 = vld [vmem:[%s812 + $0x98] sm:$0xf]
    %v833 = vld [vmem:[%s812 + $0xa0] sm:$0xf]
    %v834 = vld [vmem:[%s812 + $0xa8] sm:$0xf]
    %v835 = vld [vmem:[%s812 + $0xb0] sm:$0xf]
    %v836 = vld [vmem:[%s812 + $0xb8] sm:$0xf]
    %v837 = vld [vmem:[%s812 + $0xc0] sm:$0xf]
    %v838 = vld [vmem:[%s812 + $0xc8] sm:$0xf]
    %v839 = vld [vmem:[%s812 + $0xd0] sm:$0xf]
    %v840 = vld [vmem:[%s812 + $0xd8] sm:$0xf]
    %v841 = vld [vmem:[%s812 + $0xe0] sm:$0xf]
    %v842 = vld [vmem:[%s812 + $0xe8] sm:$0xf]
    %v843 = vld [vmem:[%s812 + $0xf0] sm:$0xf]
    %v844 = vld [vmem:[%s812 + $0xf8] sm:$0xf]
    %v845 = vpack.c.bf16 %v810, %v810
    %v846 = vpack.c.bf16 %v811, %v811
    %v847 = vlaneseq
    %v848 = vshrl.u32 %v847, 7
    %v849 = vsub.s32 6, %v848
    %v850 = vrot.slane %v86, %v849
    %v883 = vunpack.c.l.b16 %v813
    %v884 = vunpack.c.l.b16 %v814
    %v885 = vunpack.c.l.b16 %v815
    %v886 = vunpack.c.l.b16 %v816
    %v887 = vunpack.c.l.b16 %v817
    %v888 = vunpack.c.l.b16 %v818
    %v889 = vunpack.c.l.b16 %v819
    %v890 = vunpack.c.l.b16 %v820
    %v891 = vunpack.c.l.b16 %v821
    %v892 = vunpack.c.l.b16 %v822
    %v893 = vunpack.c.l.b16 %v823
    %v894 = vunpack.c.l.b16 %v824
    %v895 = vunpack.c.l.b16 %v825
    %v896 = vunpack.c.l.b16 %v826
    %v897 = vunpack.c.l.b16 %v827
    %v898 = vunpack.c.l.b16 %v828
    %v899 = vunpack.c.l.b16 %v829
    %v900 = vunpack.c.l.b16 %v830
    %v901 = vunpack.c.l.b16 %v831
    %v902 = vunpack.c.l.b16 %v832
    %v903 = vunpack.c.l.b16 %v833
    %v904 = vunpack.c.l.b16 %v834
    %v905 = vunpack.c.l.b16 %v835
    %v906 = vunpack.c.l.b16 %v836
    %v907 = vunpack.c.l.b16 %v837
    %v908 = vunpack.c.l.b16 %v838
    %v909 = vunpack.c.l.b16 %v839
    %v910 = vunpack.c.l.b16 %v840
    %v911 = vunpack.c.l.b16 %v841
    %v912 = vunpack.c.l.b16 %v842
    %v913 = vunpack.c.l.b16 %v843
    %v914 = vunpack.c.l.b16 %v844
    %v915 = vpack.c.b16 %v884, %v883
    %v916 = vpack.c.b16 %v886, %v885
    %v917 = vpack.c.b16 %v888, %v887
    %v918 = vpack.c.b16 %v890, %v889
    %v919 = vpack.c.b16 %v892, %v891
    %v920 = vpack.c.b16 %v894, %v893
    %v921 = vpack.c.b16 %v896, %v895
    %v922 = vpack.c.b16 %v898, %v897
    %v923 = vpack.c.b16 %v900, %v899
    %v924 = vpack.c.b16 %v902, %v901
    %v925 = vpack.c.b16 %v904, %v903
    %v926 = vpack.c.b16 %v906, %v905
    %v927 = vpack.c.b16 %v908, %v907
    %v928 = vpack.c.b16 %v910, %v909
    %v929 = vpack.c.b16 %v912, %v911
    %v930 = vpack.c.b16 %v914, %v913
    %947 = vmatprep.subr.bf16.mxu0 0
    %948 = vmatpush1.bf16.msra.mxu0 %v922
    %949 = vmatprep.subr.bf16.mxu0 0
    %950 = vmatpush1.bf16.msra.mxu0 %v921
    %951 = vmatprep.subr.bf16.mxu0 0
    %952 = vmatpush1.bf16.msra.mxu0 %v920
    %953 = vmatprep.subr.bf16.mxu0 0
    %954 = vmatpush1.bf16.msra.mxu0 %v919
    %955 = vmatprep.subr.bf16.mxu0 0
    %956 = vmatpush1.bf16.msra.mxu0 %v918
    %957 = vmatprep.subr.bf16.mxu0 0
    %958 = vmatpush1.bf16.msra.mxu0 %v917
    %959 = vmatprep.subr.bf16.mxu0 0
    %960 = vmatpush1.bf16.msra.mxu0 %v916
    %961 = vmatprep.subr.bf16.mxu0 0
    %962 = vmatpush1.bf16.msra.mxu0 %v915
    %963 = vmatprep.subr.bf16.mxu0 0
    %964 = vmatpush2.bf16.msra.mxu0 %v930
    %965 = vmatprep.subr.bf16.mxu0 0
    %966 = vmatpush2.bf16.msra.mxu0 %v929
    %967 = vmatprep.subr.bf16.mxu0 0
    %968 = vmatpush2.bf16.msra.mxu0 %v928
    %969 = vmatprep.subr.bf16.mxu0 0
    %970 = vmatpush2.bf16.msra.mxu0 %v927
    %971 = vmatprep.subr.bf16.mxu0 0
    %972 = vmatpush2.bf16.msra.mxu0 %v926
    %973 = vmatprep.subr.bf16.mxu0 0
    %974 = vmatpush2.bf16.msra.mxu0 %v925
    %975 = vmatprep.subr.bf16.mxu0 0
    %976 = vmatpush2.bf16.msra.mxu0 %v924
    %977 = vmatprep.subr.bf16.mxu0 0
    %978 = vmatpush2.bf16.msra.mxu0 %v923
    %979 = vmatprep.mubr.bf16.mxu0 %v846
    %980 = vmatmul.mubr.bf16.gmra.mxu0 %v845
    %v981 = vpop.f32.mrf.mxu0
    %v982 = vadd.f32 %v850, %v981
    %v983 = vpop.f32.mrf.mxu0
    %v984 = vpop.f32.mrf.mxu0
    %v985 = vpop.f32.mrf.mxu0
    %986 = vdwg.mxu0
    %v987 = vmax.f32 %v982, 0.0
    %v988 = vpack.c.bf16 %v987, %v987
    %s989 = scalar_lea.vmem [#allocation8], 768
    %v990 = vld [vmem:[%s989] sm:$0xf]
    %v991 = vld [vmem:[%s989 + $0x8] sm:$0xf]
    %v992 = vld [vmem:[%s989 + $0x10] sm:$0xf]
    %v993 = vld [vmem:[%s989 + $0x18] sm:$0xf]
    %v994 = vld [vmem:[%s989 + $0x20] sm:$0xf]
    %v995 = vld [vmem:[%s989 + $0x28] sm:$0xf]
    %v996 = vld [vmem:[%s989 + $0x30] sm:$0xf]
    %v997 = vld [vmem:[%s989 + $0x38] sm:$0xf]
    %v998 = vld [vmem:[%s989 + $0x40] sm:$0xf]
    %v999 = vld [vmem:[%s989 + $0x48] sm:$0xf]
    %v1000 = vld [vmem:[%s989 + $0x50] sm:$0xf]
    %v1001 = vld [vmem:[%s989 + $0x58] sm:$0xf]
    %v1002 = vld [vmem:[%s989 + $0x60] sm:$0xf]
    %v1003 = vld [vmem:[%s989 + $0x68] sm:$0xf]
    %v1004 = vld [vmem:[%s989 + $0x70] sm:$0xf]
    %v1005 = vld [vmem:[%s989 + $0x78] sm:$0xf]
    %v1006 = vlaneseq
    %v1007 = vshrl.u32 %v1006, 7
    %v1008 = vsub.s32 7, %v1007
    %v1009 = vrot.slane %v86, %v1008
    %v1026 = vunpack.c.l.b16 %v990
    %v1027 = vunpack.c.l.b16 %v991
    %v1028 = vunpack.c.l.b16 %v992
    %v1029 = vunpack.c.l.b16 %v993
    %v1030 = vunpack.c.l.b16 %v994
    %v1031 = vunpack.c.l.b16 %v995
    %v1032 = vunpack.c.l.b16 %v996
    %v1033 = vunpack.c.l.b16 %v997
    %v1034 = vunpack.c.l.b16 %v998
    %v1035 = vunpack.c.l.b16 %v999
    %v1036 = vunpack.c.l.b16 %v1000
    %v1037 = vunpack.c.l.b16 %v1001
    %v1038 = vunpack.c.l.b16 %v1002
    %v1039 = vunpack.c.l.b16 %v1003
    %v1040 = vunpack.c.l.b16 %v1004
    %v1041 = vunpack.c.l.b16 %v1005
    %v1042 = vpack.c.b16 %v1027, %v1026
    %v1043 = vpack.c.b16 %v1029, %v1028
    %v1044 = vpack.c.b16 %v1031, %v1030
    %v1045 = vpack.c.b16 %v1033, %v1032
    %v1046 = vpack.c.b16 %v1035, %v1034
    %v1047 = vpack.c.b16 %v1037, %v1036
    %v1048 = vpack.c.b16 %v1039, %v1038
    %v1049 = vpack.c.b16 %v1041, %v1040
    %1058 = vmatprep.subr.bf16.mxu0 0
    %1059 = vmatpush1.bf16.msra.mxu0 %v1049
    %1060 = vmatprep.subr.bf16.mxu0 0
    %1061 = vmatpush1.bf16.msra.mxu0 %v1048
    %1062 = vmatprep.subr.bf16.mxu0 0
    %1063 = vmatpush1.bf16.msra.mxu0 %v1047
    %1064 = vmatprep.subr.bf16.mxu0 0
    %1065 = vmatpush1.bf16.msra.mxu0 %v1046
    %1066 = vmatprep.subr.bf16.mxu0 0
    %1067 = vmatpush1.bf16.msra.mxu0 %v1045
    %1068 = vmatprep.subr.bf16.mxu0 0
    %1069 = vmatpush1.bf16.msra.mxu0 %v1044
    %1070 = vmatprep.subr.bf16.mxu0 0
    %1071 = vmatpush1.bf16.msra.mxu0 %v1043
    %1072 = vmatprep.subr.bf16.mxu0 0
    %1073 = vmatpush1.bf16.msra.mxu0 %v1042
    %1074 = vmatprep.subr.bf16.mxu0 0
    %1075 = vmatpush2.bf16.msra.mxu0 0
    %1076 = vmatprep.subr.bf16.mxu0 0
    %1077 = vmatpush2.bf16.msra.mxu0 0
    %1078 = vmatprep.subr.bf16.mxu0 0
    %1079 = vmatpush2.bf16.msra.mxu0 0
    %1080 = vmatprep.subr.bf16.mxu0 0
    %1081 = vmatpush2.bf16.msra.mxu0 0
    %1082 = vmatprep.subr.bf16.mxu0 0
    %1083 = vmatpush2.bf16.msra.mxu0 0
    %1084 = vmatprep.subr.bf16.mxu0 0
    %1085 = vmatpush2.bf16.msra.mxu0 0
    %1086 = vmatprep.subr.bf16.mxu0 0
    %1087 = vmatpush2.bf16.msra.mxu0 0
    %1088 = vmatprep.subr.bf16.mxu0 0
    %1089 = vmatpush2.bf16.msra.mxu0 0
    %1090 = vmatprep.mubr.bf16.mxu0 0
    %1091 = vmatmul.mubr.bf16.gmra.mxu0 %v988
    %v1092 = vpop.f32.mrf.mxu0
    %v1093 = vadd.f32 %v1009, %v1092
    %v1094 = vpop.f32.mrf.mxu0
    %v1095 = vpop.f32.mrf.mxu0
    %v1096 = vpop.f32.mrf.mxu0
    %1097 = vdwg.mxu0
    %v1098 = vtanh.pop %v1093
    %1099 = vst [vmem:[#allocation11] sm:$0xff] %v1098
    // Predicated region
    $region42: #{tpu_custom_call.1} parent=1 // pred_check
      _
    $region43: #{tpu_custom_call.1} parent=1 // pred_check_branch
      %1101 = sbr.rel (0) target = $region45
    $region44: #{tpu_custom_call.1} parent=1 // pred_region
      %s1103 = ssub.s32 128, 128
      %1104 = vsyncadd [#allocation4], %s1103
      %s1106 = sshll.u32 [#allocation11], 4
      %s1107 = int_to_ptr.vmem [resolvable:$true] %s1106
      %1109 = dma.vmem_to_hbm [thread:$0]  %s1107, 128, %s5, [#allocation4]
    $region45: #{tpu_custom_call.1} parent=1 // pred_fallthru
      _
    // Predicated region
    $region46: #{tpu_custom_call.1} parent=1 // pred_check
      _
    $region47: #{tpu_custom_call.1} parent=1 // pred_check_branch
      %1111 = sbr.rel (0) target = $region49
    $region48: #{tpu_custom_call.1} parent=1 // pred_region
      %1112 = dma.done [#allocation4], 128
    $region49: #{tpu_custom_call.1} parent=1 // pred_fallthru
      _
    %1113 = vsyncpa [#allocation3], 1
    %1114 = vsyncpa [#allocation6], 1
    %1115 = vsyncpa [#allocation9], 1
    %1116 = vsyncpa [#allocation4], 1

</llo_original>
